<compile_context>
chip_gen: v7x
topology: tpu7x:2x2x1
jax: 0.10.0
libtpu: 0.0.40
codegen_flags: <defaults>
</compile_context>

<pallas_src>
import functools

import jax
import jax.numpy as jnp
from jax.experimental import pallas as pl
from jax.experimental.pallas import tpu as pltpu

KH = KW = 3  # fixed 3x3 kernel, padding=1 ("same")


def _conv3x3_rowflat_kernel(w_ref, b_ref, mask_ref, x_ref, o_ref, *, W):
    """3x3 'same' conv on flattened image rows (Cin = Cout = 1), flatten fused.

    w_ref    : SMEM (9,)       3x3 weights, row-major (kh, kw)
    b_ref    : SMEM (1,)       bias
    mask_ref : VMEM (4, H*W)   [top, bottom, left, right] 0/1 validity masks
    x_ref    : VMEM (bn, H*W)  flattened input images (one row per image)
    o_ref    : VMEM (bn, H*W)  flattened output images (== final .view layout)
    """
    _, HW = x_ref.shape
    x = x_ref[...].astype(jnp.float32)

    # Hoisted scalar reads (once per grid step).
    w00, w01, w02, w10, w11, w12, w20, w21, w22 = [
        w_ref[i] for i in range(KH * KW)
    ]
    bias = b_ref[0]
    m_top = mask_ref[0:1, :]     # x[h-1, w] valid  (h >= 1)
    m_bot = mask_ref[1:2, :]     # x[h+1, w] valid  (h <= H-2)
    m_left = mask_ref[2:3, :]    # x[h, w-1] valid  (w >= 1)
    m_right = mask_ref[3:4, :]   # x[h, w+1] valid  (w <= W-2)

    # Vertical neighbours via XLU lane rolls along the flattened axis.
    # roll(x, s)[j] == x[j - s]; the row masks also kill the wrap-around lanes.
    x_up = pltpu.roll(x, shift=W, axis=1) * m_top        # x[h-1, w]
    x_dn = pltpu.roll(x, shift=HW - W, axis=1) * m_bot   # x[h+1, w]

    # Vertical pass of the stencil: one partial sum per kernel column.
    s_left = w00 * x_up + w10 * x + w20 * x_dn    # taps at column w (-> used at w+1)
    s_mid = w01 * x_up + w11 * x + w21 * x_dn     # taps at column w
    s_right = w02 * x_up + w12 * x + w22 * x_dn   # taps at column w (-> used at w-1)

    # Horizontal pass: shift column sums by +/-1 lane; column masks kill image
    # edges (and the single wrap-around lane of each roll).
    left = pltpu.roll(s_left, shift=1, axis=1)        # value from column w-1
    right = pltpu.roll(s_right, shift=HW - 1, axis=1)  # value from column w+1

    o_ref[...] = (s_mid + m_left * left + m_right * right + bias).astype(o_ref.dtype)


def _pick_bn(n, HW):
    """Batch block size: VMEM-budgeted, multiple of 8, grid >= 2 when N allows."""
    budget = 8 * 1024 * 1024                 # double-buffered in+out blocks, f32
    per_row = 2 * 2 * HW * 4                 # (in + out) * double-buffer * 4 B
    cap = max(8, (budget // per_row) // 8 * 8)
    half = max(8, ((-(-n // 2)) + 7) // 8 * 8)   # aim for >= 2 pipelined steps
    return min(cap, half)


def conv2d_3x3_same_flat(x, w, b):
    """x: (N, 1, H, W), w: (1, 1, 3, 3), b: (1,) -> (N, H*W) flattened conv output."""
    N, Cin, H, W = x.shape
    Cout = w.shape[0]
    assert Cin == 1 and Cout == 1, "Model uses Conv2d(1, 1, 3)"
    HW = H * W

    bn = _pick_bn(N, HW)
    Np = ((N + bn - 1) // bn) * bn           # pad ragged batch instead of bn=N fallback

    xf = x.reshape(N, HW)                    # contiguous -> free
    if Np != N:
        xf = jnp.pad(xf, ((0, Np - N), (0, 0)))

    w_flat = w.reshape(KH * KW).astype(jnp.float32)
    b_f = b.astype(jnp.float32)

    # Boundary masks (tiny constant, built once in the wrapper).
    idx = jnp.arange(HW, dtype=jnp.int32)
    row = idx // W
    col = idx % W
    masks = jnp.stack(
        [row >= 1, row <= H - 2, col >= 1, col <= W - 2], axis=0
    ).astype(jnp.float32)                     # (4, HW)

    kernel = functools.partial(_conv3x3_rowflat_kernel, W=W)

    out = pl.pallas_call(
        kernel,
        out_shape=jax.ShapeDtypeStruct((Np, HW), jnp.float32),
        grid=(Np // bn,),
        in_specs=[
            pl.BlockSpec(memory_space=pltpu.MemorySpace.SMEM),   # weights (scalars)
            pl.BlockSpec(memory_space=pltpu.MemorySpace.SMEM),   # bias (scalar)
            pl.BlockSpec((4, HW), lambda i: (0, 0)),             # boundary masks
            pl.BlockSpec((bn, HW), lambda i: (i, 0)),            # input rows
        ],
        out_specs=pl.BlockSpec((bn, HW), lambda i: (i, 0)),       # flattened output
        compiler_params=pltpu.CompilerParams(
            dimension_semantics=("parallel",),                    # v7x: 2 TCs split N
        ),
        cost_estimate=pl.CostEstimate(
            flops=2 * KH * KW * Np * HW,
            transcendentals=0,
            bytes_accessed=4 * (2 * Np * HW + 4 * HW + KH * KW + 1),
        ),
    )(w_flat, b_f, masks, xf)

    if Np != N:
        out = out[:N]
    return out


def model_forward(x, w, b):
    """Full forward pass of `Model`: conv -> (N, C*H*W).  Flatten is fused in-kernel."""
    return conv2d_3x3_same_flat(x, w, b)


if __name__ == "__main__":
    # Deterministic parameters, matching Model.__init__ (fill 0.3 / 0.2).
    w = jnp.full((1, 1, 3, 3), 0.3, dtype=jnp.float32)
    b = jnp.full((1,), 0.2, dtype=jnp.float32)

    def ref_forward(x):
        y = jax.lax.conv_general_dilated(
            x, w, window_strides=(1, 1), padding=((1, 1), (1, 1)),
            dimension_numbers=("NCHW", "OIHW", "NCHW"),
        ) + b.reshape(1, -1, 1, 1)
        return y.reshape(x.shape[0], -1)

    # Small deterministic demo: batch 64 (-> bn=32, 2 pipelined "parallel" steps),
    # 16x16 spatial (-> H*W = 256 lane-dense output rows).
    key = jax.random.PRNGKey(0)
    N, H, W = 64, 16, 16
    x = jax.random.normal(key, (N, 1, H, W), dtype=jnp.float32)

    out = jax.block_until_ready(model_forward(x, w, b))
    assert out.shape == (N, H * W), out.shape
    assert jnp.allclose(out, ref_forward(x), atol=1e-5, rtol=1e-5), \
        "mismatch vs reference conv"

    # Ragged batch exercises the wrapper-side N padding path (no bn=N fallback).
    N2 = 13
    x2 = jax.random.normal(jax.random.PRNGKey(1), (N2, 1, H, W), dtype=jnp.float32)
    out2 = jax.block_until_ready(model_forward(x2, w, b))
    assert out2.shape == (N2, H * W), out2.shape
    assert jnp.allclose(out2, ref_forward(x2), atol=1e-5, rtol=1e-5), \
        "mismatch vs reference conv (ragged batch)"

    # Analytic check matching lesson.py semantics: all-ones input -> every
    # interior pixel = 9 * 0.3 + 0.2 (zero padding handled at the borders).
    x_ones = jnp.ones((8, 1, H, W), dtype=jnp.float32)
    out_ones = jax.block_until_ready(model_forward(x_ones, w, b))
    interior = out_ones.reshape(8, H, W)[:, 1:-1, 1:-1]
    assert jnp.allclose(interior, 9 * 0.3 + 0.2, atol=1e-5)
    assert jnp.allclose(out_ones, ref_forward(x_ones), atol=1e-5, rtol=1e-5)

    print("KERNEL_OK")
</pallas_src>

<mosaic_0001>
module attributes {stable_mosaic.version = 11 : i64} {
  func.func @_conv3x3_rowflat_kernel(%arg0: i32, %arg1: memref<9xf32, #tpu.memory_space<smem>>, %arg2: memref<1xf32, #tpu.memory_space<smem>>, %arg3: memref<4x256xf32, #tpu.memory_space<vmem>>, %arg4: memref<32x256xf32, #tpu.memory_space<vmem>>, %arg5: memref<32x256xf32, #tpu.memory_space<vmem>>) attributes {dimension_semantics = [#tpu.dimension_semantics<parallel>], iteration_bounds = array<i64: 2>, scalar_prefetch = 0 : i64, scratch_operands = 0 : i64, tpu.core_type = #tpu.core_type<tc>, window_params = [{transform_indices = @transform_0, window_bounds = array<i64: 9>}, {transform_indices = @transform_1, window_bounds = array<i64: 1>}, {pipeline_mode = #tpu.pipeline_mode<synchronous>, transform_indices = @transform_2, window_bounds = array<i64: 4, 256>}, {transform_indices = @transform_3, window_bounds = array<i64: 32, 256>}, {transform_indices = @transform_4, window_bounds = array<i64: 32, 256>}]} {
    %c0 = arith.constant 0 : index
    %c0_0 = arith.constant 0 : index
    %0 = vector.load %arg4[%c0, %c0_0] : memref<32x256xf32, #tpu.memory_space<vmem>>, vector<32x256xf32>
    %c0_1 = arith.constant 0 : index
    %1 = memref.load %arg1[%c0_1] : memref<9xf32, #tpu.memory_space<smem>>
    %c1 = arith.constant 1 : index
    %2 = memref.load %arg1[%c1] : memref<9xf32, #tpu.memory_space<smem>>
    %c2 = arith.constant 2 : index
    %3 = memref.load %arg1[%c2] : memref<9xf32, #tpu.memory_space<smem>>
    %c3 = arith.constant 3 : index
    %4 = memref.load %arg1[%c3] : memref<9xf32, #tpu.memory_space<smem>>
    %c4 = arith.constant 4 : index
    %5 = memref.load %arg1[%c4] : memref<9xf32, #tpu.memory_space<smem>>
    %c5 = arith.constant 5 : index
    %6 = memref.load %arg1[%c5] : memref<9xf32, #tpu.memory_space<smem>>
    %c6 = arith.constant 6 : index
    %7 = memref.load %arg1[%c6] : memref<9xf32, #tpu.memory_space<smem>>
    %c7 = arith.constant 7 : index
    %8 = memref.load %arg1[%c7] : memref<9xf32, #tpu.memory_space<smem>>
    %c8 = arith.constant 8 : index
    %9 = memref.load %arg1[%c8] : memref<9xf32, #tpu.memory_space<smem>>
    %c0_2 = arith.constant 0 : index
    %10 = memref.load %arg2[%c0_2] : memref<1xf32, #tpu.memory_space<smem>>
    %c0_3 = arith.constant 0 : index
    %c0_4 = arith.constant 0 : index
    %11 = vector.load %arg3[%c0_3, %c0_4] : memref<4x256xf32, #tpu.memory_space<vmem>>, vector<1x256xf32>
    %c1_5 = arith.constant 1 : index
    %c0_6 = arith.constant 0 : index
    %12 = vector.load %arg3[%c1_5, %c0_6] : memref<4x256xf32, #tpu.memory_space<vmem>>, vector<1x256xf32>
    %c2_7 = arith.constant 2 : index
    %c0_8 = arith.constant 0 : index
    %13 = vector.load %arg3[%c2_7, %c0_8] : memref<4x256xf32, #tpu.memory_space<vmem>>, vector<1x256xf32>
    %c3_9 = arith.constant 3 : index
    %c0_10 = arith.constant 0 : index
    %14 = vector.load %arg3[%c3_9, %c0_10] : memref<4x256xf32, #tpu.memory_space<vmem>>, vector<1x256xf32>
    %c16_i32 = arith.constant 16 : i32
    %15 = tpu.dynamic_rotate %0 by %c16_i32 dim 1 : vector<32x256xf32>, i32 -> vector<32x256xf32>
    %16 = vector.broadcast %11 : vector<1x256xf32> to vector<32x256xf32>
    %17 = arith.mulf %15, %16 : vector<32x256xf32>
    %c240_i32 = arith.constant 240 : i32
    %18 = tpu.dynamic_rotate %0 by %c240_i32 dim 1 : vector<32x256xf32>, i32 -> vector<32x256xf32>
    %19 = vector.broadcast %12 : vector<1x256xf32> to vector<32x256xf32>
    %20 = arith.mulf %18, %19 : vector<32x256xf32>
    %21 = vector.broadcast %1 : f32 to vector<32x256xf32>
    %22 = arith.mulf %21, %17 : vector<32x256xf32>
    %23 = vector.broadcast %4 : f32 to vector<32x256xf32>
    %24 = arith.mulf %23, %0 : vector<32x256xf32>
    %25 = arith.addf %22, %24 : vector<32x256xf32>
    %26 = vector.broadcast %7 : f32 to vector<32x256xf32>
    %27 = arith.mulf %26, %20 : vector<32x256xf32>
    %28 = arith.addf %25, %27 : vector<32x256xf32>
    %29 = vector.broadcast %2 : f32 to vector<32x256xf32>
    %30 = arith.mulf %29, %17 : vector<32x256xf32>
    %31 = vector.broadcast %5 : f32 to vector<32x256xf32>
    %32 = arith.mulf %31, %0 : vector<32x256xf32>
    %33 = arith.addf %30, %32 : vector<32x256xf32>
    %34 = vector.broadcast %8 : f32 to vector<32x256xf32>
    %35 = arith.mulf %34, %20 : vector<32x256xf32>
    %36 = arith.addf %33, %35 : vector<32x256xf32>
    %37 = vector.broadcast %3 : f32 to vector<32x256xf32>
    %38 = arith.mulf %37, %17 : vector<32x256xf32>
    %39 = vector.broadcast %6 : f32 to vector<32x256xf32>
    %40 = arith.mulf %39, %0 : vector<32x256xf32>
    %41 = arith.addf %38, %40 : vector<32x256xf32>
    %42 = vector.broadcast %9 : f32 to vector<32x256xf32>
    %43 = arith.mulf %42, %20 : vector<32x256xf32>
    %44 = arith.addf %41, %43 : vector<32x256xf32>
    %c1_i32 = arith.constant 1 : i32
    %45 = tpu.dynamic_rotate %28 by %c1_i32 dim 1 : vector<32x256xf32>, i32 -> vector<32x256xf32>
    %c255_i32 = arith.constant 255 : i32
    %46 = tpu.dynamic_rotate %44 by %c255_i32 dim 1 : vector<32x256xf32>, i32 -> vector<32x256xf32>
    %47 = vector.broadcast %13 : vector<1x256xf32> to vector<32x256xf32>
    %48 = arith.mulf %47, %45 : vector<32x256xf32>
    %49 = arith.addf %36, %48 : vector<32x256xf32>
    %50 = vector.broadcast %14 : vector<1x256xf32> to vector<32x256xf32>
    %51 = arith.mulf %50, %46 : vector<32x256xf32>
    %52 = arith.addf %49, %51 : vector<32x256xf32>
    %53 = vector.broadcast %10 : f32 to vector<32x256xf32>
    %54 = arith.addf %52, %53 : vector<32x256xf32>
    %c0_11 = arith.constant 0 : index
    %c0_12 = arith.constant 0 : index
    %55 = vector.load %arg5[%c0_11, %c0_12] : memref<32x256xf32, #tpu.memory_space<vmem>>, vector<32x256xf32>
    tpu.vector_store %arg5[%c0_11, %c0_12], %54 {strides = array<i32>} : memref<32x256xf32, #tpu.memory_space<vmem>>, vector<32x256xf32>,
    return
  }
  func.func @transform_0(%arg0: i32) -> i32 {
    %c0_i32 = arith.constant 0 : i32
    %c0_i32_0 = arith.constant 0 : i32
    return %c0_i32 : i32
  }
  func.func @transform_1(%arg0: i32) -> i32 {
    %c0_i32 = arith.constant 0 : i32
    %c0_i32_0 = arith.constant 0 : i32
    return %c0_i32 : i32
  }
  func.func @transform_2(%arg0: i32) -> (i32, i32) {
    %c0_i32 = arith.constant 0 : i32
    %c0_i32_0 = arith.constant 0 : i32
    %c0_i32_1 = arith.constant 0 : i32
    return %c0_i32, %c0_i32_0 : i32, i32
  }
  func.func @transform_3(%arg0: i32) -> (i32, i32) {
    %c0_i32 = arith.constant 0 : i32
    %c0_i32_0 = arith.constant 0 : i32
    return %arg0, %c0_i32 : i32, i32
  }
  func.func @transform_4(%arg0: i32) -> (i32, i32) {
    %c0_i32 = arith.constant 0 : i32
    %c0_i32_0 = arith.constant 0 : i32
    return %arg0, %c0_i32 : i32, i32
  }
}

</mosaic_0001>

<llo_original>
// kernel: tpu_custom_call.1
$region0: #{tpu_custom_call.1}
  #allocation0 [shape = 'u32[]', space=smem, size = 0x4, offset = 0x4, fixed_abs, tag = 'smem constant byte address 0x4 - core index']
  #allocation1 [shape = 'u32[144,128]{1,0:T(1,128)}', space=vmem, size = 0x12000, scoped, tag = 'internal scratch']
  #allocation2 [shape = 'f32[1]{0:T(128)S(6)}', space=smem, size = 0x200, scoped, tag = 'scoped memory for tpu_custom_call.1']
  %s0 = inlined_call_operand.vmem [shape: f32[9], index: 0, kind: input, shape index: {}]
  %s1 = inlined_call_operand.<no memory space> [shape: f32[1], index: 1, kind: input, shape index: {}]
  %s2 = inlined_call_operand.hbm [shape: f32[4,256], index: 2, kind: input, shape index: {}]
  %s3 = inlined_call_operand.hbm [shape: f32[64,256], index: 3, kind: input, shape index: {}]
  %s4 = inlined_call_operand.hbm [shape: f32[64,256], index: 4, kind: output, shape index: {}]
  %s5 = sld [smem:[#allocation0]]
  $region61: #{tpu_custom_call.1} parent=0
    _
  %s7 = ssub.s32 1, %s5
  %s8 = scalar_select 0, %s7, %s5
  %9 = sst [smem:[#allocation2]] %s1
  $region1: #{tpu_custom_call.1} parent=0
    #allocation3 [shape = 'u8[512]{0}', space=smem, size = 0x200, scoped, tag = 'input window, operand 0, single buffered']
    #allocation4 [shape = 's32[2]{0}', space=sflag, size = 0x8, scoped, tag = 'scoped memory for tpu_custom_call.1']
    #allocation5 [shape = 's32[2]{0}', space=sflag, size = 0x8, scoped, tag = 'scoped memory for tpu_custom_call.1']
    #allocation6 [shape = 's32[2]{0}', space=sflag, size = 0x8, scoped, tag = 'scoped memory for tpu_custom_call.1']
    #allocation7 [shape = 'u8[4096]{0}', space=vmem, size = 0x1000, scoped, tag = 'input window, operand 2, single buffered']
    #allocation8 [shape = 'u8[65536]{0}', space=vmem, size = 0x10000, scoped, tag = 'input window, operand 3']
    #allocation9 [shape = 's32[2]{0}', space=sflag, size = 0x8, scoped, tag = 'scoped memory for tpu_custom_call.1']
    #allocation10 [shape = 'u8[65536]{0}', space=vmem, size = 0x10000, scoped, tag = 'output window, operand 0']
    %10 = vsyncpa [#allocation6], 0
    %11 = vsyncpa [#allocation4], 0
    %12 = vsyncpa [#allocation9], 0
    %s13 = scalar_lea.sflag [#allocation9], 1
    %14 = vsyncpa %s13, 0
    %15 = vsyncpa [#allocation5], 0
    %s16 = scalar_lea.sflag [#allocation5], 1
    %17 = vsyncpa %s16, 0
    loop: start=0, step=1, limit=4
    $region2: #{tpu_custom_call.1} parent=1 // loop_pre_header
      _
    $region3: #{tpu_custom_call.1} parent=1 // loop_header
      %s19 = sphi 0, %s23
      %p20 = scmp.ge.s32.totalorder %s19, 4
      %s27 = sphi 0, %s27
      %s29 = sphi 0, %s27
      %s30 = sphi 0, %s29
      %s44 = sphi 0, %s30
      %s48 = sphi 0, %s48
      %s50 = sphi 0, %s48
      %s51 = sphi 0, %s50
      %s65 = sphi 0, %s51
      %s69 = sphi 0, %s69
      %s71 = sphi 0, %s69
      %s72 = sphi 0, %s71
      %s86 = sphi 0, %s72
      %s92 = sphi 0, %s94
      %s95 = sphi 0, %s92
      %s96 = sphi 0, %s95
      %s112 = sphi 0, %s96
      %s118 = sphi 0, %s120
      %s121 = sphi 0, %s118
      %s122 = sphi 0, %s121
      %s138 = sphi 0, %s122
    $region4: #{tpu_custom_call.1} parent=1 // loop_header_branch
      %22 = sbr.rel (%p20) target = $region8
    $region5: #{tpu_custom_call.1} parent=1 // loop_body
      %s24 = ssub.s32 %s19, 1
      %s25 = ssub.s32 %s19, 2
      %s26 = sadd.s32 %s19, 1
      %s28 = sadd.s32 %s27, 1
      %p31 = scmp.eq.s32.totalorder %s19, 1
      %p32 = scmp.ne.s32.totalorder %s27, %s29
      %p33 = scmp.eq.s32.totalorder %s19, 0
      %p34 = por %p32, %p33
      %p35 = scmp.ne.s32.totalorder %s27, %s29
      %p36 = scmp.eq.s32.totalorder %s24, 1
      %p37 = por %p35, %p36
      %p38 = scmp.ne.s32.totalorder %s29, %s30
      %p39 = scmp.eq.s32.totalorder %s24, 0
      %p40 = por %p38, %p39
      %p41 = scmp.ne.s32.totalorder %s29, %s30
      %p42 = scmp.eq.s32.totalorder %s25, 1
      %p43 = por %p41, %p42
      %p45 = scmp.ne.s32.totalorder %s30, %s44
      %p46 = scmp.eq.s32.totalorder %s25, 0
      %p47 = por %p45, %p46
      %s49 = sadd.s32 %s48, 1
      %p52 = scmp.eq.s32.totalorder %s19, 1
      %p53 = scmp.ne.s32.totalorder %s48, %s50
      %p54 = scmp.eq.s32.totalorder %s19, 0
      %p55 = por %p53, %p54
      %p56 = scmp.ne.s32.totalorder %s48, %s50
      %p57 = scmp.eq.s32.totalorder %s24, 1
      %p58 = por %p56, %p57
      %p59 = scmp.ne.s32.totalorder %s50, %s51
      %p60 = scmp.eq.s32.totalorder %s24, 0
      %p61 = por %p59, %p60
      %p62 = scmp.ne.s32.totalorder %s50, %s51
      %p63 = scmp.eq.s32.totalorder %s25, 1
      %p64 = por %p62, %p63
      %p66 = scmp.ne.s32.totalorder %s51, %s65
      %p67 = scmp.eq.s32.totalorder %s25, 0
      %p68 = por %p66, %p67
      %s70 = sadd.s32 %s69, 1
      %p73 = scmp.eq.s32.totalorder %s19, 1
      %p74 = scmp.ne.s32.totalorder %s69, %s71
      %p75 = scmp.eq.s32.totalorder %s19, 0
      %p76 = por %p74, %p75
      %p77 = scmp.ne.s32.totalorder %s69, %s71
      %p78 = scmp.eq.s32.totalorder %s24, 1
      %p79 = por %p77, %p78
      %p80 = scmp.ne.s32.totalorder %s71, %s72
      %p81 = scmp.eq.s32.totalorder %s24, 0
      %p82 = por %p80, %p81
      %p83 = scmp.ne.s32.totalorder %s71, %s72
      %p84 = scmp.eq.s32.totalorder %s25, 1
      %p85 = por %p83, %p84
      %p87 = scmp.ne.s32.totalorder %s72, %s86
      %p88 = scmp.eq.s32.totalorder %s25, 0
      %p89 = por %p87, %p88
      %s90 = ssub.s32 %s19, %s26
      %p91 = scmp.eq.s32.totalorder %s90, 0
      %s93 = sadd.s32 %s92, 1
      %s94 = scalar_select %p91, %s92, %s93
      %p97 = pneg %p91
      %p98 = scmp.eq.s32.totalorder %s19, 1
      %p99 = por %p97, %p98
      %p100 = scmp.ne.s32.totalorder %s92, %s95
      %p101 = scmp.eq.s32.totalorder %s19, 0
      %p102 = por %p100, %p101
      %p103 = scmp.ne.s32.totalorder %s92, %s95
      %p104 = scmp.eq.s32.totalorder %s24, 1
      %p105 = por %p103, %p104
      %p106 = scmp.ne.s32.totalorder %s95, %s96
      %p107 = scmp.eq.s32.totalorder %s24, 0
      %p108 = por %p106, %p107
      %p109 = scmp.ne.s32.totalorder %s95, %s96
      %p110 = scmp.eq.s32.totalorder %s25, 1
      %p111 = por %p109, %p110
      %p113 = scmp.ne.s32.totalorder %s96, %s112
      %p114 = scmp.eq.s32.totalorder %s25, 0
      %p115 = por %p113, %p114
      %s116 = ssub.s32 %s19, %s26
      %p117 = scmp.eq.s32.totalorder %s116, 0
      %s119 = sadd.s32 %s118, 1
      %s120 = scalar_select %p117, %s118, %s119
      %p123 = pneg %p117
      %p124 = scmp.eq.s32.totalorder %s19, 1
      %p125 = por %p123, %p124
      %p126 = scmp.ne.s32.totalorder %s118, %s121
      %p127 = scmp.eq.s32.totalorder %s19, 0
      %p128 = por %p126, %p127
      %p129 = scmp.ne.s32.totalorder %s118, %s121
      %p130 = scmp.eq.s32.totalorder %s24, 1
      %p131 = por %p129, %p130
      %p132 = scmp.ne.s32.totalorder %s121, %s122
      %p133 = scmp.eq.s32.totalorder %s24, 0
      %p134 = por %p132, %p133
      %p135 = scmp.ne.s32.totalorder %s121, %s122
      %p136 = scmp.eq.s32.totalorder %s25, 1
      %p137 = por %p135, %p136
      %p139 = scmp.ne.s32.totalorder %s122, %s138
      %p140 = scmp.eq.s32.totalorder %s25, 0
      %p141 = por %p139, %p140
      %p142 = scmp.le.s32.totalorder 1, %s19
      %p143 = scmp.lt.s32.totalorder %s19, 3
      %p144 = pnand %p142, %p143
      %p145 = pneg %p144
      // Predicated region
      $region9: #{tpu_custom_call.1} parent=5 // pred_check
        _
      $region10: #{tpu_custom_call.1} parent=5 // pred_check_branch
        %147 = sbr.rel (%p144) target = $region12
      $region11: #{tpu_custom_call.1} parent=5 // pred_region
        %s148 = ssub.s32 %s19, 1
        // Predicated region
        $region13: #{tpu_custom_call.1} parent=11 // pred_check
          %p149 = pneg %p40
        $region14: #{tpu_custom_call.1} parent=11 // pred_check_branch
          %151 = sbr.rel (%p149) target = $region16
        $region15: #{tpu_custom_call.1} parent=11 // pred_region
          %s153 = ssub.s32 16, 16
          %154 = vsyncadd [#allocation6], %s153
          %s156 = sshll.u32 %s0, 4
          %s157 = int_to_ptr.vmem [resolvable:$true] %s156
          %159 = dma.vmem_to_smem %s157, 16, [#allocation3], [#allocation6]
        $region16: #{tpu_custom_call.1} parent=11 // pred_fallthru
          _
        // Predicated region
        $region17: #{tpu_custom_call.1} parent=11 // pred_check
          %p160 = pneg %p61
        $region18: #{tpu_custom_call.1} parent=11 // pred_check_branch
          %162 = sbr.rel (%p160) target = $region20
        $region19: #{tpu_custom_call.1} parent=11 // pred_region
          _
        $region20: #{tpu_custom_call.1} parent=11 // pred_fallthru
          _
        // Predicated region
        $region21: #{tpu_custom_call.1} parent=11 // pred_check
          %p163 = pneg %p82
        $region22: #{tpu_custom_call.1} parent=11 // pred_check_branch
          %165 = sbr.rel (%p163) target = $region24
        $region23: #{tpu_custom_call.1} parent=11 // pred_region
          %s167 = ssub.s32 128, 128
          %168 = vsyncadd [#allocation4], %s167
          %s170 = sshll.u32 [#allocation7], 4
          %s171 = int_to_ptr.vmem [resolvable:$true] %s170
          %173 = dma.hbm_to_vmem [thread:$0]  %s2, 128, %s171, [#allocation4]
        $region24: #{tpu_custom_call.1} parent=11 // pred_fallthru
          _
      $region12: #{tpu_custom_call.1} parent=5 // pred_fallthru
        _
      %p174 = scmp.lt.s32.totalorder %s19, 2
      // Predicated region
      $region25: #{tpu_custom_call.1} parent=5 // pred_check
        %p175 = pneg %p174
      $region26: #{tpu_custom_call.1} parent=5 // pred_check_branch
        %177 = sbr.rel (%p175) target = $region28
      $region27: #{tpu_custom_call.1} parent=5 // pred_region
        // Predicated region
        $region29: #{tpu_custom_call.1} parent=27 // pred_check
          %p178 = pneg %p102
        $region30: #{tpu_custom_call.1} parent=27 // pred_check_branch
          %180 = sbr.rel (%p178) target = $region32
        $region31: #{tpu_custom_call.1} parent=27 // pred_region
          %s181 = sand.u32 %s92, 1
          %s182 = scalar_lea.sflag [#allocation9], %s181
          %s183 = sand.u32 %s92, 1
          %s184 = smul.addr %s183, 64
          %s185 = scalar_lea.vmem [#allocation8], %s184
          %s186 = smul.u32 4, %s19
          %s188 = ssub.s32 1024, 1024
          %189 = vsyncadd %s182, %s188
          %s190 = smul.addr %s186, 2
          %s191 = smul.addr %s190, 128
          %s192 = scalar_lea.hbm %s3, %s191
          %s193 = sshll.u32 %s185, 4
          %s194 = int_to_ptr.vmem [resolvable:$true] %s193
          %199 = dma.hbm_to_vmem [thread:$0]  %s192, 1024, %s194, %s182, 256, 256, 16
        $region32: #{tpu_custom_call.1} parent=27 // pred_fallthru
          _
      $region28: #{tpu_custom_call.1} parent=5 // pred_fallthru
        _
      %p200 = scmp.le.s32.totalorder 1, %s19
      %p201 = scmp.lt.s32.totalorder %s19, 3
      %p202 = pnand %p200, %p201
      %p203 = pneg %p202
      // Predicated region
      $region33: #{tpu_custom_call.1} parent=5 // pred_check
        _
      $region34: #{tpu_custom_call.1} parent=5 // pred_check_branch
        %205 = sbr.rel (%p202) target = $region36
      $region35: #{tpu_custom_call.1} parent=5 // pred_region
        %s206 = ssub.s32 %s19, 1
        // Predicated region
        $region37: #{tpu_custom_call.1} parent=35 // pred_check
          %p207 = pneg %p40
        $region38: #{tpu_custom_call.1} parent=35 // pred_check_branch
          %209 = sbr.rel (%p207) target = $region40
        $region39: #{tpu_custom_call.1} parent=35 // pred_region
          %210 = dma.done [#allocation6], 16
        $region40: #{tpu_custom_call.1} parent=35 // pred_fallthru
          _
        // Predicated region
        $region41: #{tpu_custom_call.1} parent=35 // pred_check
          %p211 = pneg %p82
        $region42: #{tpu_custom_call.1} parent=35 // pred_check_branch
          %213 = sbr.rel (%p211) target = $region44
        $region43: #{tpu_custom_call.1} parent=35 // pred_region
          %214 = dma.done [#allocation4], 128
        $region44: #{tpu_custom_call.1} parent=35 // pred_fallthru
          _
        %s215 = sand.u32 %s95, 1
        %s216 = scalar_lea.sflag [#allocation9], %s215
        %s217 = sand.u32 %s95, 1
        %s218 = smul.addr %s217, 64
        %s219 = scalar_lea.vmem [#allocation8], %s218
        // Predicated region
        $region45: #{tpu_custom_call.1} parent=35 // pred_check
          %p220 = pneg %p108
        $region46: #{tpu_custom_call.1} parent=35 // pred_check_branch
          %222 = sbr.rel (%p220) target = $region48
        $region47: #{tpu_custom_call.1} parent=35 // pred_region
          %223 = dma.done %s216, 1024
        $region48: #{tpu_custom_call.1} parent=35 // pred_fallthru
          _
        %224 = sfence
        %p225 = pneg %p40
        %p226 = pneg %p37
        %p227 = pneg %p61
        %p228 = pneg %p58
        %p229 = pneg %p82
        %p230 = pneg %p79
        %s231 = sand.u32 %s95, 1
        %s232 = scalar_lea.sflag [#allocation9], %s231
        %s233 = sand.u32 %s95, 1
        %s234 = smul.addr %s233, 64
        %s235 = scalar_lea.vmem [#allocation8], %s234
        %p236 = pneg %p108
        %p237 = pneg %p105
        %p238 = pneg %p134
        %p239 = pneg %p131
        %s240 = sand.u32 %s121, 1
        %s241 = scalar_lea.sflag [#allocation5], %s240
        %s242 = sand.u32 %s121, 1
        %s243 = smul.addr %s242, 64
        %s244 = scalar_lea.vmem [#allocation10], %s243
        %s245 = smul.u32 4, %s24
        %s246 = smul.u32 4, %s24
        %v247 = vld [vmem:[%s219] sm:$0xff]
        %v248 = vld [vmem:[%s219 + $0x8] sm:$0xff]
        %v249 = vld [vmem:[%s219 + $0x10] sm:$0xff]
        %v250 = vld [vmem:[%s219 + $0x18] sm:$0xff]
        %v251 = vld [vmem:[%s219 + $0x20] sm:$0xff]
        %v252 = vld [vmem:[%s219 + $0x28] sm:$0xff]
        %v253 = vld [vmem:[%s219 + $0x30] sm:$0xff]
        %v254 = vld [vmem:[%s219 + $0x38] sm:$0xff]
        %s255 = sld [smem:[#allocation3]]
        %s256 = sld [smem:[#allocation3 + $0x1]]
        %s257 = sld [smem:[#allocation3 + $0x2]]
        %s258 = sld [smem:[#allocation3 + $0x3]]
        %s259 = sld [smem:[#allocation3 + $0x4]]
        %s260 = sld [smem:[#allocation3 + $0x5]]
        %s261 = sld [smem:[#allocation3 + $0x6]]
        %s262 = sld [smem:[#allocation3 + $0x7]]
        %s263 = sld [smem:[#allocation3 + $0x8]]
        %s264 = sld [smem:[#allocation2]]
        %v265 = vld [vmem:[#allocation7] ss:$4 sm:$0x3]
        %s266 = scalar_lea.vmem [#allocation7], 1
        %v267 = vld [vmem:[%s266] ss:$4 sm:$0x3]
        %s268 = scalar_lea.vmem [#allocation7], 2
        %v269 = vld [vmem:[%s268] ss:$4 sm:$0x3]
        %s270 = scalar_lea.vmem [#allocation7], 3
        %v271 = vld [vmem:[%s270] ss:$4 sm:$0x3]
        %272 = vrot.lane.b32.xlu0 %v247, 16
        %v273 = vpop.permute.xlu0 %272
        %274 = vrot.lane.b32.xlu0 %v249, 16
        %v275 = vpop.permute.xlu0 %274
        %276 = vrot.lane.b32.xlu0 %v251, 16
        %v277 = vpop.permute.xlu0 %276
        %278 = vrot.lane.b32.xlu0 %v253, 16
        %v279 = vpop.permute.xlu0 %278
        %280 = vrot.lane.b32.xlu0 %v248, 16
        %v281 = vpop.permute.xlu0 %280
        %282 = vrot.lane.b32.xlu0 %v250, 16
        %v283 = vpop.permute.xlu0 %282
        %284 = vrot.lane.b32.xlu0 %v252, 16
        %v285 = vpop.permute.xlu0 %284
        %286 = vrot.lane.b32.xlu0 %v254, 16
        %v287 = vpop.permute.xlu0 %286
        %v288 = vlaneseq
        %v289 = vand.u32 %v288, 127
        %vm290 = vcmp.lt.s32.totalorder %v289, 16
        %v291 = vsel %vm290, %v273, %v281
        %v292 = vsel %vm290, %v275, %v283
        %v293 = vsel %vm290, %v277, %v285
        %v294 = vsel %vm290, %v279, %v287
        %v295 = vsel %vm290, %v281, %v273
        %v296 = vsel %vm290, %v283, %v275
        %v297 = vsel %vm290, %v285, %v277
        %v298 = vsel %vm290, %v287, %v279
        %v300 = vlaneseq
        %v301 = vshrl.u32 %v300, 7
        %v302 = vsub.s32 0, %v301
        %v303 = vrot.slane %v265, %v302
        %v304 = vlaneseq
        %v305 = vshrl.u32 %v304, 7
        %v306 = vsub.s32 1, %v305
        %v307 = vrot.slane %v265, %v306
        %v310 = vmul.f32 %v295, %v303
        %v311 = vmul.f32 %v291, %v307
        %v312 = vmul.f32 %v296, %v303
        %v313 = vmul.f32 %v292, %v307
        %v314 = vmul.f32 %v297, %v303
        %v315 = vmul.f32 %v293, %v307
        %v316 = vmul.f32 %v298, %v303
        %v317 = vmul.f32 %v294, %v307
        %318 = vrot.lane.b32.xlu0 %v247, 112
        %v319 = vpop.permute.xlu0 %318
        %320 = vrot.lane.b32.xlu0 %v249, 112
        %v321 = vpop.permute.xlu0 %320
        %322 = vrot.lane.b32.xlu0 %v251, 112
        %v323 = vpop.permute.xlu0 %322
        %324 = vrot.lane.b32.xlu0 %v253, 112
        %v325 = vpop.permute.xlu0 %324
        %326 = vrot.lane.b32.xlu0 %v248, 112
        %v327 = vpop.permute.xlu0 %326
        %328 = vrot.lane.b32.xlu0 %v250, 112
        %v329 = vpop.permute.xlu0 %328
        %330 = vrot.lane.b32.xlu0 %v252, 112
        %v331 = vpop.permute.xlu0 %330
        %332 = vrot.lane.b32.xlu0 %v254, 112
        %v333 = vpop.permute.xlu0 %332
        %vm334 = vcmp.lt.s32.totalorder %v289, 112
        %v335 = vsel %vm334, %v319, %v327
        %v336 = vsel %vm334, %v321, %v329
        %v337 = vsel %vm334, %v323, %v331
        %v338 = vsel %vm334, %v325, %v333
        %v339 = vsel %vm334, %v327, %v319
        %v340 = vsel %vm334, %v329, %v321
        %v341 = vsel %vm334, %v331, %v323
        %v342 = vsel %vm334, %v333, %v325
        %v344 = vlaneseq
        %v345 = vshrl.u32 %v344, 7
        %v346 = vsub.s32 0, %v345
        %v347 = vrot.slane %v267, %v346
        %v348 = vlaneseq
        %v349 = vshrl.u32 %v348, 7
        %v350 = vsub.s32 1, %v349
        %v351 = vrot.slane %v267, %v350
        %v354 = vmul.f32 %v335, %v347
        %v355 = vmul.f32 %v339, %v351
        %v356 = vmul.f32 %v336, %v347
        %v357 = vmul.f32 %v340, %v351
        %v358 = vmul.f32 %v337, %v347
        %v359 = vmul.f32 %v341, %v351
        %v360 = vmul.f32 %v338, %v347
        %v361 = vmul.f32 %v342, %v351
        %v362 = vstv %s255
        %v363 = vmul.f32 %v362, %v310
        %v364 = vmul.f32 %v362, %v311
        %v365 = vmul.f32 %v362, %v312
        %v366 = vmul.f32 %v362, %v313
        %v367 = vmul.f32 %v362, %v314
        %v368 = vmul.f32 %v362, %v315
        %v369 = vmul.f32 %v362, %v316
        %v370 = vmul.f32 %v362, %v317
        %v371 = vstv %s258
        %v372 = vmul.f32 %v371, %v247
        %v373 = vmul.f32 %v371, %v248
        %v374 = vmul.f32 %v371, %v249
        %v375 = vmul.f32 %v371, %v250
        %v376 = vmul.f32 %v371, %v251
        %v377 = vmul.f32 %v371, %v252
        %v378 = vmul.f32 %v371, %v253
        %v379 = vmul.f32 %v371, %v254
        %v380 = vadd.f32 %v363, %v372
        %v381 = vadd.f32 %v364, %v373
        %v382 = vadd.f32 %v365, %v374
        %v383 = vadd.f32 %v366, %v375
        %v384 = vadd.f32 %v367, %v376
        %v385 = vadd.f32 %v368, %v377
        %v386 = vadd.f32 %v369, %v378
        %v387 = vadd.f32 %v370, %v379
        %v388 = vstv %s261
        %v389 = vmul.f32 %v388, %v354
        %v390 = vmul.f32 %v388, %v355
        %v391 = vmul.f32 %v388, %v356
        %v392 = vmul.f32 %v388, %v357
        %v393 = vmul.f32 %v388, %v358
        %v394 = vmul.f32 %v388, %v359
        %v395 = vmul.f32 %v388, %v360
        %v396 = vmul.f32 %v388, %v361
        %v397 = vadd.f32 %v380, %v389
        %v398 = vadd.f32 %v381, %v390
        %v399 = vadd.f32 %v382, %v391
        %v400 = vadd.f32 %v383, %v392
        %v401 = vadd.f32 %v384, %v393
        %v402 = vadd.f32 %v385, %v394
        %v403 = vadd.f32 %v386, %v395
        %v404 = vadd.f32 %v387, %v396
        %v405 = vstv %s256
        %v406 = vmul.f32 %v405, %v310
        %v407 = vmul.f32 %v405, %v311
        %v408 = vmul.f32 %v405, %v312
        %v409 = vmul.f32 %v405, %v313
        %v410 = vmul.f32 %v405, %v314
        %v411 = vmul.f32 %v405, %v315
        %v412 = vmul.f32 %v405, %v316
        %v413 = vmul.f32 %v405, %v317
        %v414 = vstv %s259
        %v415 = vmul.f32 %v414, %v247
        %v416 = vmul.f32 %v414, %v248
        %v417 = vmul.f32 %v414, %v249
        %v418 = vmul.f32 %v414, %v250
        %v419 = vmul.f32 %v414, %v251
        %v420 = vmul.f32 %v414, %v252
        %v421 = vmul.f32 %v414, %v253
        %v422 = vmul.f32 %v414, %v254
        %v423 = vadd.f32 %v406, %v415
        %v424 = vadd.f32 %v407, %v416
        %v425 = vadd.f32 %v408, %v417
        %v426 = vadd.f32 %v409, %v418
        %v427 = vadd.f32 %v410, %v419
        %v428 = vadd.f32 %v411, %v420
        %v429 = vadd.f32 %v412, %v421
        %v430 = vadd.f32 %v413, %v422
        %v431 = vstv %s262
        %v432 = vmul.f32 %v431, %v354
        %v433 = vmul.f32 %v431, %v355
        %v434 = vmul.f32 %v431, %v356
        %v435 = vmul.f32 %v431, %v357
        %v436 = vmul.f32 %v431, %v358
        %v437 = vmul.f32 %v431, %v359
        %v438 = vmul.f32 %v431, %v360
        %v439 = vmul.f32 %v431, %v361
        %v440 = vadd.f32 %v423, %v432
        %v441 = vadd.f32 %v424, %v433
        %v442 = vadd.f32 %v425, %v434
        %v443 = vadd.f32 %v426, %v435
        %v444 = vadd.f32 %v427, %v436
        %v445 = vadd.f32 %v428, %v437
        %v446 = vadd.f32 %v429, %v438
        %v447 = vadd.f32 %v430, %v439
        %v448 = vstv %s257
        %v449 = vmul.f32 %v448, %v310
        %v450 = vmul.f32 %v448, %v311
        %v451 = vmul.f32 %v448, %v312
        %v452 = vmul.f32 %v448, %v313
        %v453 = vmul.f32 %v448, %v314
        %v454 = vmul.f32 %v448, %v315
        %v455 = vmul.f32 %v448, %v316
        %v456 = vmul.f32 %v448, %v317
        %v457 = vstv %s260
        %v458 = vmul.f32 %v457, %v247
        %v459 = vmul.f32 %v457, %v248
        %v460 = vmul.f32 %v457, %v249
        %v461 = vmul.f32 %v457, %v250
        %v462 = vmul.f32 %v457, %v251
        %v463 = vmul.f32 %v457, %v252
        %v464 = vmul.f32 %v457, %v253
        %v465 = vmul.f32 %v457, %v254
        %v466 = vadd.f32 %v449, %v458
        %v467 = vadd.f32 %v450, %v459
        %v468 = vadd.f32 %v451, %v460
        %v469 = vadd.f32 %v452, %v461
        %v470 = vadd.f32 %v453, %v462
        %v471 = vadd.f32 %v454, %v463
        %v472 = vadd.f32 %v455, %v464
        %v473 = vadd.f32 %v456, %v465
        %v474 = vstv %s263
        %v475 = vmul.f32 %v474, %v354
        %v476 = vmul.f32 %v474, %v355
        %v477 = vmul.f32 %v474, %v356
        %v478 = vmul.f32 %v474, %v357
        %v479 = vmul.f32 %v474, %v358
        %v480 = vmul.f32 %v474, %v359
        %v481 = vmul.f32 %v474, %v360
        %v482 = vmul.f32 %v474, %v361
        %v483 = vadd.f32 %v466, %v475
        %v484 = vadd.f32 %v467, %v476
        %v485 = vadd.f32 %v468, %v477
        %v486 = vadd.f32 %v469, %v478
        %v487 = vadd.f32 %v470, %v479
        %v488 = vadd.f32 %v471, %v480
        %v489 = vadd.f32 %v472, %v481
        %v490 = vadd.f32 %v473, %v482
        %491 = vrot.lane.b32.xlu0 %v397, 1
        %v492 = vpop.permute.xlu0 %491
        %493 = vrot.lane.b32.xlu0 %v399, 1
        %v494 = vpop.permute.xlu0 %493
        %495 = vrot.lane.b32.xlu0 %v401, 1
        %v496 = vpop.permute.xlu0 %495
        %497 = vrot.lane.b32.xlu0 %v403, 1
        %v498 = vpop.permute.xlu0 %497
        %499 = vrot.lane.b32.xlu0 %v398, 1
        %v500 = vpop.permute.xlu0 %499
        %501 = vrot.lane.b32.xlu0 %v400, 1
        %v502 = vpop.permute.xlu0 %501
        %503 = vrot.lane.b32.xlu0 %v402, 1
        %v504 = vpop.permute.xlu0 %503
        %505 = vrot.lane.b32.xlu0 %v404, 1
        %v506 = vpop.permute.xlu0 %505
        %vm507 = vcmp.lt.s32.totalorder %v289, 1
        %v508 = vsel %vm507, %v492, %v500
        %v509 = vsel %vm507, %v494, %v502
        %v510 = vsel %vm507, %v496, %v504
        %v511 = vsel %vm507, %v498, %v506
        %v512 = vsel %vm507, %v500, %v492
        %v513 = vsel %vm507, %v502, %v494
        %v514 = vsel %vm507, %v504, %v496
        %v515 = vsel %vm507, %v506, %v498
        %516 = vrot.lane.b32.xlu0 %v483, 127
        %v517 = vpop.permute.xlu0 %516
        %518 = vrot.lane.b32.xlu0 %v485, 127
        %v519 = vpop.permute.xlu0 %518
        %520 = vrot.lane.b32.xlu0 %v487, 127
        %v521 = vpop.permute.xlu0 %520
        %522 = vrot.lane.b32.xlu0 %v489, 127
        %v523 = vpop.permute.xlu0 %522
        %524 = vrot.lane.b32.xlu0 %v484, 127
        %v525 = vpop.permute.xlu0 %524
        %526 = vrot.lane.b32.xlu0 %v486, 127
        %v527 = vpop.permute.xlu0 %526
        %528 = vrot.lane.b32.xlu0 %v488, 127
        %v529 = vpop.permute.xlu0 %528
        %530 = vrot.lane.b32.xlu0 %v490, 127
        %v531 = vpop.permute.xlu0 %530
        %vm532 = vcmp.lt.s32.totalorder %v289, 127
        %v533 = vsel %vm532, %v517, %v525
        %v534 = vsel %vm532, %v519, %v527
        %v535 = vsel %vm532, %v521, %v529
        %v536 = vsel %vm532, %v523, %v531
        %v537 = vsel %vm532, %v525, %v517
        %v538 = vsel %vm532, %v527, %v519
        %v539 = vsel %vm532, %v529, %v521
        %v540 = vsel %vm532, %v531, %v523
        %v542 = vlaneseq
        %v543 = vshrl.u32 %v542, 7
        %v544 = vsub.s32 0, %v543
        %v545 = vrot.slane %v269, %v544
        %v546 = vlaneseq
        %v547 = vshrl.u32 %v546, 7
        %v548 = vsub.s32 1, %v547
        %v549 = vrot.slane %v269, %v548
        %v552 = vmul.f32 %v545, %v512
        %v553 = vmul.f32 %v549, %v508
        %v554 = vmul.f32 %v545, %v513
        %v555 = vmul.f32 %v549, %v509
        %v556 = vmul.f32 %v545, %v514
        %v557 = vmul.f32 %v549, %v510
        %v558 = vmul.f32 %v545, %v515
        %v559 = vmul.f32 %v549, %v511
        %v560 = vadd.f32 %v440, %v552
        %v561 = vadd.f32 %v441, %v553
        %v562 = vadd.f32 %v442, %v554
        %v563 = vadd.f32 %v443, %v555
        %v564 = vadd.f32 %v444, %v556
        %v565 = vadd.f32 %v445, %v557
        %v566 = vadd.f32 %v446, %v558
        %v567 = vadd.f32 %v447, %v559
        %v569 = vlaneseq
        %v570 = vshrl.u32 %v569, 7
        %v571 = vsub.s32 0, %v570
        %v572 = vrot.slane %v271, %v571
        %v573 = vlaneseq
        %v574 = vshrl.u32 %v573, 7
        %v575 = vsub.s32 1, %v574
        %v576 = vrot.slane %v271, %v575
        %v579 = vmul.f32 %v572, %v533
        %v580 = vmul.f32 %v576, %v537
        %v581 = vmul.f32 %v572, %v534
        %v582 = vmul.f32 %v576, %v538
        %v583 = vmul.f32 %v572, %v535
        %v584 = vmul.f32 %v576, %v539
        %v585 = vmul.f32 %v572, %v536
        %v586 = vmul.f32 %v576, %v540
        %v587 = vadd.f32 %v560, %v579
        %v588 = vadd.f32 %v561, %v580
        %v589 = vadd.f32 %v562, %v581
        %v590 = vadd.f32 %v563, %v582
        %v591 = vadd.f32 %v564, %v583
        %v592 = vadd.f32 %v565, %v584
        %v593 = vadd.f32 %v566, %v585
        %v594 = vadd.f32 %v567, %v586
        %v595 = vstv %s264
        %v596 = vadd.f32 %v587, %v595
        %v597 = vadd.f32 %v588, %v595
        %v598 = vadd.f32 %v589, %v595
        %v599 = vadd.f32 %v590, %v595
        %v600 = vadd.f32 %v591, %v595
        %v601 = vadd.f32 %v592, %v595
        %v602 = vadd.f32 %v593, %v595
        %v603 = vadd.f32 %v594, %v595
        %604 = vst [vmem:[%s244] sm:$0xff] %v596
        %605 = vst [vmem:[%s244 + $0x8] sm:$0xff] %v597
        %606 = vst [vmem:[%s244 + $0x10] sm:$0xff] %v598
        %607 = vst [vmem:[%s244 + $0x18] sm:$0xff] %v599
        %608 = vst [vmem:[%s244 + $0x20] sm:$0xff] %v600
        %609 = vst [vmem:[%s244 + $0x28] sm:$0xff] %v601
        %610 = vst [vmem:[%s244 + $0x30] sm:$0xff] %v602
        %611 = vst [vmem:[%s244 + $0x38] sm:$0xff] %v603
        %s612 = sand.u32 %s121, 1
        %s613 = scalar_lea.sflag [#allocation5], %s612
        %s614 = sand.u32 %s121, 1
        %s615 = smul.addr %s614, 64
        %s616 = scalar_lea.vmem [#allocation10], %s615
        // Predicated region
        $region49: #{tpu_custom_call.1} parent=35 // pred_check
          %p617 = pneg %p131
        $region50: #{tpu_custom_call.1} parent=35 // pred_check_branch
          %619 = sbr.rel (%p617) target = $region52
        $region51: #{tpu_custom_call.1} parent=35 // pred_region
          %s620 = smul.u32 4, %s24
          %s622 = ssub.s32 1024, 1024
          %623 = vsyncadd %s613, %s622
          %s624 = smul.addr %s620, 2
          %s625 = smul.addr %s624, 128
          %s626 = scalar_lea.hbm %s4, %s625
          %s627 = sshll.u32 %s616, 4
          %s628 = int_to_ptr.vmem [resolvable:$true] %s627
          %633 = dma.vmem_to_hbm [thread:$0]  %s628, 1024, %s626, %s613, 256, 256, 16
        $region52: #{tpu_custom_call.1} parent=35 // pred_fallthru
          _
      $region36: #{tpu_custom_call.1} parent=5 // pred_fallthru
        _
      %p634 = scmp.le.s32.totalorder 2, %s19
      // Predicated region
      $region53: #{tpu_custom_call.1} parent=5 // pred_check
        %p635 = pneg %p634
      $region54: #{tpu_custom_call.1} parent=5 // pred_check_branch
        %637 = sbr.rel (%p635) target = $region56
      $region55: #{tpu_custom_call.1} parent=5 // pred_region
        %s638 = ssub.s32 %s19, 2
        // Predicated region
        $region57: #{tpu_custom_call.1} parent=55 // pred_check
          %p639 = pneg %p137
        $region58: #{tpu_custom_call.1} parent=55 // pred_check_branch
          %641 = sbr.rel (%p639) target = $region60
        $region59: #{tpu_custom_call.1} parent=55 // pred_region
          %s642 = sand.u32 %s122, 1
          %s643 = scalar_lea.sflag [#allocation5], %s642
          %s644 = sand.u32 %s122, 1
          %s645 = smul.addr %s644, 64
          %s646 = scalar_lea.vmem [#allocation10], %s645
          %647 = dma.done %s643, 1024
        $region60: #{tpu_custom_call.1} parent=55 // pred_fallthru
          _
      $region56: #{tpu_custom_call.1} parent=5 // pred_fallthru
        _
    $region6: #{tpu_custom_call.1} parent=1 // loop_footer
      %s23 = sadd.s32 1, %s19
    $region7: #{tpu_custom_call.1} parent=1 // loop_footer_branch
      %18 = sbr.rel target = $region3
    $region8: #{tpu_custom_call.1} parent=1 // loop_exit
      _
    %648 = vsyncpa [#allocation4], 1
    %s649 = scalar_lea.sflag [#allocation4], 1
    %650 = vsyncpa %s649, 1
    %651 = vsyncpa [#allocation9], 1
    %s652 = scalar_lea.sflag [#allocation9], 1
    %653 = vsyncpa %s652, 1
    %654 = vsyncpa [#allocation5], 1
    %s655 = scalar_lea.sflag [#allocation5], 1
    %656 = vsyncpa %s655, 1
    %657 = vsyncpa [#allocation6], 1
    %s658 = scalar_lea.sflag [#allocation6], 1
    %659 = vsyncpa %s658, 1

</llo_original>
